<compile_context>
chip_gen: v7x
topology: tpu7x:2x2x1
jax: 0.10.0
libtpu: 0.0.40
codegen_flags: <defaults>
</compile_context>

<pallas_src>
import numpy as np
import jax
import jax.numpy as jnp
from jax.experimental import pallas as pl
from jax.experimental.pallas import tpu as pltpu

SIGMA = 1.0
KSIZE = 5
PAD = 2


# -----------------------------------------------------------------------------
# Host-side (numpy) parameter construction -- mirrors weights_init(sigma)
# -----------------------------------------------------------------------------
def _gaussian_taps_1d(sigma, size=KSIZE):
    """1-D impulse response of scipy.ndimage.gaussian_filter on a length-`size` delta
    (mode='reflect', truncate=4.0), computed without scipy.  The 2-D kernel copied into
    every depthwise filter by the PyTorch module is exactly outer(r, r) (rank-1), which
    is what makes the separable fast path below valid."""
    radius = int(4.0 * float(sigma) + 0.5)
    xs = np.arange(-radius, radius + 1, dtype=np.float64)
    phi = np.exp(-0.5 / (sigma * sigma) * xs * xs)
    phi /= phi.sum()

    def reflect(i, n):  # scipy 'reflect' boundary: (d c b a | a b c d | d c b a)
        while i < 0 or i >= n:
            i = -i - 1 if i < 0 else 2 * n - 1 - i
        return i

    delta = np.zeros(size, dtype=np.float64)
    delta[size // 2] = 1.0
    r = np.zeros(size, dtype=np.float64)
    for i in range(size):
        r[i] = sum(phi[j + radius] * delta[reflect(i + j, size)]
                   for j in range(-radius, radius + 1))
    return r


def _reflect_shift_matrices(n, ksize=KSIZE, pad=PAD):
    """S[t, i, j] = 1 iff input column i feeds tap t of output column j under a torch-style
    ReflectionPad(pad) (mirror about the edge, edge not repeated).  Then
      z @ (sum_t w_t * S[t])
    is the 1-D cross-correlation of reflect-padded z with taps w along the last axis."""
    assert n >= pad + 1
    mats = np.zeros((ksize, n, n), dtype=np.float32)
    for t in range(ksize):
        for j in range(n):
            src = j + t - pad
            if src < 0:
                src = -src                   # ReflectionPad2d: -1 -> 1, -2 -> 2
            elif src >= n:
                src = 2 * (n - 1) - src      # n -> n-2, n+1 -> n-3
            mats[t, src, j] = 1.0
    return mats


# -----------------------------------------------------------------------------
# Pallas kernel
# -----------------------------------------------------------------------------
def _gaussian_blur_kernel(taps_ref, aw_ref, x_ref, out_ref, xh_ref):
    """One grid step = one batch element, all C channels.

    taps_ref : (C, 5)       SMEM  per-channel 1-D taps (H-direction pass)
    aw_ref   : (C, W, W)    VMEM  per-channel W-direction reflect-pad+conv matrix
    x_ref    : (1, C, H, W) VMEM  unpadded input block
    out_ref  : (1, C, H, W) VMEM  output block
    xh_ref   : (H+4, W)     VMEM  scratch: H-direction reflect-padded plane
    """
    C = x_ref.shape[1]
    H = x_ref.shape[2]
    W = x_ref.shape[3]

    for c in range(C):  # static unroll, C == 3
        # Hoisted scalar tap reads (SMEM) -- kept off the MAC critical path.
        w = [taps_ref[c, t] for t in range(KSIZE)]

        # ---- fused ReflectionPad2d(2) along H: build the 2-row halo in VMEM ----
        # (never round-trips HBM; the column reflection is baked into aw_ref)
        xh_ref[PAD:PAD + H, :] = x_ref[0, c, :, :].astype(jnp.float32)
        xh_ref[0:1, :] = x_ref[0, c, 2:3, :].astype(jnp.float32)
        xh_ref[1:2, :] = x_ref[0, c, 1:2, :].astype(jnp.float32)
        xh_ref[PAD + H:PAD + H + 1, :] = x_ref[0, c, H - 2:H - 1, :].astype(jnp.float32)
        xh_ref[PAD + H + 1:PAD + H + 2, :] = x_ref[0, c, H - 3:H - 2, :].astype(jnp.float32)

        # ---- separable pass 1: 5 taps along H (cheap sublane-offset reads, VPU) ----
        z = w[0] * xh_ref[0:H, :]
        for t in range(1, KSIZE):
            z = z + w[t] * xh_ref[t:t + H, :]            # (H, W) float32

        # ---- separable pass 2: 5 taps + reflection along W as one MXU matmul ----
        # (no lane-misaligned slices on the VPU; MXU is otherwise idle here)
        y = jnp.dot(z, aw_ref[c], preferred_element_type=jnp.float32)   # (H, W)

        out_ref[0, c, :, :] = y.astype(out_ref.dtype)


# -----------------------------------------------------------------------------
# Wrapper
# -----------------------------------------------------------------------------
def gaussian_layer(x, taps_1d):
    """ReflectionPad2d(2) + depthwise 5x5 Gaussian conv (groups=C, bias=None).

    x       : (N, C, H, W) float32, NCHW (matches the PyTorch module)
    taps_1d : (C, 5) float32 -- per-channel 1-D taps; the module's 2-D depthwise
              kernel is outer(taps, taps) (exactly rank-1), so the separable path
              below reproduces it to fp tolerance.
    """
    N, C, H, W = x.shape
    assert H > PAD and W > PAD, "ReflectionPad2d(2) needs spatial dims > 2"

    taps_f32 = taps_1d.astype(jnp.float32)

    # Fold W-direction reflection pad + 5 taps into one banded (W, W) matrix per
    # channel (built from constant 0/1 shift-reflect matrices).
    shift_mats = jnp.asarray(_reflect_shift_matrices(W))                 # (5, W, W)
    a_w = jnp.einsum("ck,kij->cij", taps_f32, shift_mats)                # (C, W, W)

    return pl.pallas_call(
        _gaussian_blur_kernel,
        out_shape=jax.ShapeDtypeStruct((N, C, H, W), x.dtype),
        grid=(N,),
        in_specs=[
            # per-channel H-direction taps -> SMEM scalars
            pl.BlockSpec(memory_space=pltpu.MemorySpace.SMEM),
            # per-channel W-direction reflect+conv matrices, VMEM-resident
            pl.BlockSpec((C, W, W), lambda n: (0, 0, 0)),
            # one batch element per grid step, all channels in one block
            pl.BlockSpec((1, C, H, W), lambda n: (n, 0, 0, 0)),
        ],
        out_specs=pl.BlockSpec((1, C, H, W), lambda n: (n, 0, 0, 0)),
        scratch_shapes=[pltpu.VMEM((H + 2 * PAD, W), jnp.float32)],
        compiler_params=pltpu.CompilerParams(
            dimension_semantics=("parallel",),      # batch shards across TCs on v7x
            vmem_limit_bytes=32 * 1024 * 1024,
        ),
    )(taps_f32, a_w, x)


# -----------------------------------------------------------------------------
# Pure-jnp reference (dense 25-tap cross-correlation, independent code path)
# -----------------------------------------------------------------------------
def _reference(x, weights_2d):
    N, C, H, W = x.shape
    x_pad = jnp.pad(x, ((0, 0), (0, 0), (PAD, PAD), (PAD, PAD)), mode="reflect")
    out = jnp.zeros((N, C, H, W), jnp.float32)
    for di in range(KSIZE):
        for dj in range(KSIZE):
            out = out + weights_2d[None, :, di, dj, None, None] * \
                x_pad[:, :, di:di + H, dj:dj + W]
    return out.astype(x.dtype)


if __name__ == "__main__":
    N, C, H, W = 2, 3, 16, 16          # Conv2d(3, 3, 5, groups=3) => 3 channels
    key = jax.random.PRNGKey(0)
    x = jax.random.normal(key, (N, C, H, W), dtype=jnp.float32)

    # Deterministic parameters: the same Gaussian impulse response in every
    # depthwise filter, exactly like weights_init(sigma=1.0).
    r = _gaussian_taps_1d(SIGMA)                                        # (5,) float64
    taps = jnp.asarray(np.broadcast_to(r.astype(np.float32), (C, KSIZE)).copy())
    weights_2d = jnp.asarray(
        np.broadcast_to(np.outer(r, r).astype(np.float32), (C, KSIZE, KSIZE)).copy())

    out = jax.block_until_ready(gaussian_layer(x, taps))
    ref = jax.block_until_ready(_reference(x, weights_2d))

    assert out.shape == (N, C, H, W)
    np.testing.assert_allclose(np.asarray(out), np.asarray(ref), rtol=1e-5, atol=1e-5)

    print("KERNEL_OK")
</pallas_src>

<mosaic_0001>
module attributes {stable_mosaic.version = 11 : i64} {
  func.func @_gaussian_blur_kernel(%arg0: i32, %arg1: memref<3x5xf32, #tpu.memory_space<smem>>, %arg2: memref<3x16x16xf32, #tpu.memory_space<vmem>>, %arg3: memref<1x3x16x16xf32, #tpu.memory_space<vmem>>, %arg4: memref<1x3x16x16xf32, #tpu.memory_space<vmem>>, %arg5: memref<20x16xf32, #tpu.memory_space<vmem>>) attributes {dimension_semantics = [#tpu.dimension_semantics<parallel>], iteration_bounds = array<i64: 2>, scalar_prefetch = 0 : i64, scratch_operands = 1 : i64, tpu.core_type = #tpu.core_type<tc>, window_params = [{transform_indices = @transform_0, window_bounds = array<i64: 3, 5>}, {pipeline_mode = #tpu.pipeline_mode<synchronous>, transform_indices = @transform_1, window_bounds = array<i64: 3, 16, 16>}, {transform_indices = @transform_2, window_bounds = array<i64: 1, 3, 16, 16>}, {transform_indices = @transform_3, window_bounds = array<i64: 1, 3, 16, 16>}]} {
    %c0 = arith.constant 0 : index
    %c0_0 = arith.constant 0 : index
    %0 = memref.load %arg1[%c0, %c0_0] : memref<3x5xf32, #tpu.memory_space<smem>>
    %c0_1 = arith.constant 0 : index
    %c1 = arith.constant 1 : index
    %1 = memref.load %arg1[%c0_1, %c1] : memref<3x5xf32, #tpu.memory_space<smem>>
    %c0_2 = arith.constant 0 : index
    %c2 = arith.constant 2 : index
    %2 = memref.load %arg1[%c0_2, %c2] : memref<3x5xf32, #tpu.memory_space<smem>>
    %c0_3 = arith.constant 0 : index
    %c3 = arith.constant 3 : index
    %3 = memref.load %arg1[%c0_3, %c3] : memref<3x5xf32, #tpu.memory_space<smem>>
    %c0_4 = arith.constant 0 : index
    %c4 = arith.constant 4 : index
    %4 = memref.load %arg1[%c0_4, %c4] : memref<3x5xf32, #tpu.memory_space<smem>>
    %c0_5 = arith.constant 0 : index
    %c0_6 = arith.constant 0 : index
    %c0_7 = arith.constant 0 : index
    %c0_8 = arith.constant 0 : index
    %5 = vector.load %arg3[%c0_5, %c0_6, %c0_7, %c0_8] : memref<1x3x16x16xf32, #tpu.memory_space<vmem>>, vector<1x1x16x16xf32>
    %6 = vector.shape_cast %5 : vector<1x1x16x16xf32> to vector<16x16xf32>
    %c2_9 = arith.constant 2 : index
    %c0_10 = arith.constant 0 : index
    %7 = vector.load %arg5[%c2_9, %c0_10] : memref<20x16xf32, #tpu.memory_space<vmem>>, vector<16x16xf32>
    tpu.vector_store %arg5[%c2_9, %c0_10], %6 {strides = array<i32>} : memref<20x16xf32, #tpu.memory_space<vmem>>, vector<16x16xf32>,
    %c0_11 = arith.constant 0 : index
    %c0_12 = arith.constant 0 : index
    %c2_13 = arith.constant 2 : index
    %c0_14 = arith.constant 0 : index
    %8 = vector.load %arg3[%c0_11, %c0_12, %c2_13, %c0_14] : memref<1x3x16x16xf32, #tpu.memory_space<vmem>>, vector<1x1x1x16xf32>
    %9 = vector.shape_cast %8 : vector<1x1x1x16xf32> to vector<1x16xf32>
    %c0_15 = arith.constant 0 : index
    %c0_16 = arith.constant 0 : index
    %10 = vector.load %arg5[%c0_15, %c0_16] : memref<20x16xf32, #tpu.memory_space<vmem>>, vector<1x16xf32>
    tpu.vector_store %arg5[%c0_15, %c0_16], %9 {strides = array<i32>} : memref<20x16xf32, #tpu.memory_space<vmem>>, vector<1x16xf32>,
    %c0_17 = arith.constant 0 : index
    %c0_18 = arith.constant 0 : index
    %c1_19 = arith.constant 1 : index
    %c0_20 = arith.constant 0 : index
    %11 = vector.load %arg3[%c0_17, %c0_18, %c1_19, %c0_20] : memref<1x3x16x16xf32, #tpu.memory_space<vmem>>, vector<1x1x1x16xf32>
    %12 = vector.shape_cast %11 : vector<1x1x1x16xf32> to vector<1x16xf32>
    %c1_21 = arith.constant 1 : index
    %c0_22 = arith.constant 0 : index
    %13 = vector.load %arg5[%c1_21, %c0_22] : memref<20x16xf32, #tpu.memory_space<vmem>>, vector<1x16xf32>
    tpu.vector_store %arg5[%c1_21, %c0_22], %12 {strides = array<i32>} : memref<20x16xf32, #tpu.memory_space<vmem>>, vector<1x16xf32>,
    %c0_23 = arith.constant 0 : index
    %c0_24 = arith.constant 0 : index
    %c14 = arith.constant 14 : index
    %c0_25 = arith.constant 0 : index
    %14 = vector.load %arg3[%c0_23, %c0_24, %c14, %c0_25] : memref<1x3x16x16xf32, #tpu.memory_space<vmem>>, vector<1x1x1x16xf32>
    %15 = vector.shape_cast %14 : vector<1x1x1x16xf32> to vector<1x16xf32>
    %c18 = arith.constant 18 : index
    %c0_26 = arith.constant 0 : index
    %16 = vector.load %arg5[%c18, %c0_26] : memref<20x16xf32, #tpu.memory_space<vmem>>, vector<1x16xf32>
    tpu.vector_store %arg5[%c18, %c0_26], %15 {strides = array<i32>} : memref<20x16xf32, #tpu.memory_space<vmem>>, vector<1x16xf32>,
    %c0_27 = arith.constant 0 : index
    %c0_28 = arith.constant 0 : index
    %c13 = arith.constant 13 : index
    %c0_29 = arith.constant 0 : index
    %17 = vector.load %arg3[%c0_27, %c0_28, %c13, %c0_29] : memref<1x3x16x16xf32, #tpu.memory_space<vmem>>, vector<1x1x1x16xf32>
    %18 = vector.shape_cast %17 : vector<1x1x1x16xf32> to vector<1x16xf32>
    %c19 = arith.constant 19 : index
    %c0_30 = arith.constant 0 : index
    %19 = vector.load %arg5[%c19, %c0_30] : memref<20x16xf32, #tpu.memory_space<vmem>>, vector<1x16xf32>
    tpu.vector_store %arg5[%c19, %c0_30], %18 {strides = array<i32>} : memref<20x16xf32, #tpu.memory_space<vmem>>, vector<1x16xf32>,
    %c0_31 = arith.constant 0 : index
    %c0_32 = arith.constant 0 : index
    %20 = vector.load %arg5[%c0_31, %c0_32] : memref<20x16xf32, #tpu.memory_space<vmem>>, vector<16x16xf32>
    %21 = vector.broadcast %0 : f32 to vector<16x16xf32>
    %22 = arith.mulf %21, %20 : vector<16x16xf32>
    %c1_33 = arith.constant 1 : index
    %c0_34 = arith.constant 0 : index
    %23 = vector.load %arg5[%c1_33, %c0_34] : memref<20x16xf32, #tpu.memory_space<vmem>>, vector<16x16xf32>
    %24 = vector.broadcast %1 : f32 to vector<16x16xf32>
    %25 = arith.mulf %24, %23 : vector<16x16xf32>
    %26 = arith.addf %22, %25 : vector<16x16xf32>
    %c2_35 = arith.constant 2 : index
    %c0_36 = arith.constant 0 : index
    %27 = vector.load %arg5[%c2_35, %c0_36] : memref<20x16xf32, #tpu.memory_space<vmem>>, vector<16x16xf32>
    %28 = vector.broadcast %2 : f32 to vector<16x16xf32>
    %29 = arith.mulf %28, %27 : vector<16x16xf32>
    %30 = arith.addf %26, %29 : vector<16x16xf32>
    %c3_37 = arith.constant 3 : index
    %c0_38 = arith.constant 0 : index
    %31 = vector.load %arg5[%c3_37, %c0_38] : memref<20x16xf32, #tpu.memory_space<vmem>>, vector<16x16xf32>
    %32 = vector.broadcast %3 : f32 to vector<16x16xf32>
    %33 = arith.mulf %32, %31 : vector<16x16xf32>
    %34 = arith.addf %30, %33 : vector<16x16xf32>
    %c4_39 = arith.constant 4 : index
    %c0_40 = arith.constant 0 : index
    %35 = vector.load %arg5[%c4_39, %c0_40] : memref<20x16xf32, #tpu.memory_space<vmem>>, vector<16x16xf32>
    %36 = vector.broadcast %4 : f32 to vector<16x16xf32>
    %37 = arith.mulf %36, %35 : vector<16x16xf32>
    %38 = arith.addf %34, %37 : vector<16x16xf32>
    %c0_41 = arith.constant 0 : index
    %c0_42 = arith.constant 0 : index
    %c0_43 = arith.constant 0 : index
    %39 = vector.load %arg2[%c0_41, %c0_42, %c0_43] : memref<3x16x16xf32, #tpu.memory_space<vmem>>, vector<1x16x16xf32>
    %40 = vector.shape_cast %39 : vector<1x16x16xf32> to vector<16x16xf32>
    %cst = arith.constant dense<0.000000e+00> : vector<16x16xf32>
    %41 = tpu.matmul %38, %40, %cst {dimension_numbers = #tpu.dot_dimension_numbers<[1], [0], [0], [1], [0, 0, 1, 1], [], []>} : vector<16x16xf32>, vector<16x16xf32>, vector<16x16xf32> -> vector<16x16xf32>
    %c0_44 = arith.constant 0 : index
    %c0_45 = arith.constant 0 : index
    %c0_46 = arith.constant 0 : index
    %c0_47 = arith.constant 0 : index
    %42 = vector.load %arg4[%c0_44, %c0_45, %c0_46, %c0_47] : memref<1x3x16x16xf32, #tpu.memory_space<vmem>>, vector<1x1x16x16xf32>
    %43 = vector.shape_cast %42 : vector<1x1x16x16xf32> to vector<16x16xf32>
    %44 = vector.shape_cast %41 : vector<16x16xf32> to vector<1x1x16x16xf32>
    tpu.vector_store %arg4[%c0_44, %c0_45, %c0_46, %c0_47], %44 {strides = array<i32>} : memref<1x3x16x16xf32, #tpu.memory_space<vmem>>, vector<1x1x16x16xf32>,
    %c1_48 = arith.constant 1 : index
    %c0_49 = arith.constant 0 : index
    %45 = memref.load %arg1[%c1_48, %c0_49] : memref<3x5xf32, #tpu.memory_space<smem>>
    %c1_50 = arith.constant 1 : index
    %c1_51 = arith.constant 1 : index
    %46 = memref.load %arg1[%c1_50, %c1_51] : memref<3x5xf32, #tpu.memory_space<smem>>
    %c1_52 = arith.constant 1 : index
    %c2_53 = arith.constant 2 : index
    %47 = memref.load %arg1[%c1_52, %c2_53] : memref<3x5xf32, #tpu.memory_space<smem>>
    %c1_54 = arith.constant 1 : index
    %c3_55 = arith.constant 3 : index
    %48 = memref.load %arg1[%c1_54, %c3_55] : memref<3x5xf32, #tpu.memory_space<smem>>
    %c1_56 = arith.constant 1 : index
    %c4_57 = arith.constant 4 : index
    %49 = memref.load %arg1[%c1_56, %c4_57] : memref<3x5xf32, #tpu.memory_space<smem>>
    %c0_58 = arith.constant 0 : index
    %c1_59 = arith.constant 1 : index
    %c0_60 = arith.constant 0 : index
    %c0_61 = arith.constant 0 : index
    %50 = vector.load %arg3[%c0_58, %c1_59, %c0_60, %c0_61] : memref<1x3x16x16xf32, #tpu.memory_space<vmem>>, vector<1x1x16x16xf32>
    %51 = vector.shape_cast %50 : vector<1x1x16x16xf32> to vector<16x16xf32>
    %c2_62 = arith.constant 2 : index
    %c0_63 = arith.constant 0 : index
    %52 = vector.load %arg5[%c2_62, %c0_63] : memref<20x16xf32, #tpu.memory_space<vmem>>, vector<16x16xf32>
    tpu.vector_store %arg5[%c2_62, %c0_63], %51 {strides = array<i32>} : memref<20x16xf32, #tpu.memory_space<vmem>>, vector<16x16xf32>,
    %c0_64 = arith.constant 0 : index
    %c1_65 = arith.constant 1 : index
    %c2_66 = arith.constant 2 : index
    %c0_67 = arith.constant 0 : index
    %53 = vector.load %arg3[%c0_64, %c1_65, %c2_66, %c0_67] : memref<1x3x16x16xf32, #tpu.memory_space<vmem>>, vector<1x1x1x16xf32>
    %54 = vector.shape_cast %53 : vector<1x1x1x16xf32> to vector<1x16xf32>
    %c0_68 = arith.constant 0 : index
    %c0_69 = arith.constant 0 : index
    %55 = vector.load %arg5[%c0_68, %c0_69] : memref<20x16xf32, #tpu.memory_space<vmem>>, vector<1x16xf32>
    tpu.vector_store %arg5[%c0_68, %c0_69], %54 {strides = array<i32>} : memref<20x16xf32, #tpu.memory_space<vmem>>, vector<1x16xf32>,
    %c0_70 = arith.constant 0 : index
    %c1_71 = arith.constant 1 : index
    %c1_72 = arith.constant 1 : index
    %c0_73 = arith.constant 0 : index
    %56 = vector.load %arg3[%c0_70, %c1_71, %c1_72, %c0_73] : memref<1x3x16x16xf32, #tpu.memory_space<vmem>>, vector<1x1x1x16xf32>
    %57 = vector.shape_cast %56 : vector<1x1x1x16xf32> to vector<1x16xf32>
    %c1_74 = arith.constant 1 : index
    %c0_75 = arith.constant 0 : index
    %58 = vector.load %arg5[%c1_74, %c0_75] : memref<20x16xf32, #tpu.memory_space<vmem>>, vector<1x16xf32>
    tpu.vector_store %arg5[%c1_74, %c0_75], %57 {strides = array<i32>} : memref<20x16xf32, #tpu.memory_space<vmem>>, vector<1x16xf32>,
    %c0_76 = arith.constant 0 : index
    %c1_77 = arith.constant 1 : index
    %c14_78 = arith.constant 14 : index
    %c0_79 = arith.constant 0 : index
    %59 = vector.load %arg3[%c0_76, %c1_77, %c14_78, %c0_79] : memref<1x3x16x16xf32, #tpu.memory_space<vmem>>, vector<1x1x1x16xf32>
    %60 = vector.shape_cast %59 : vector<1x1x1x16xf32> to vector<1x16xf32>
    %c18_80 = arith.constant 18 : index
    %c0_81 = arith.constant 0 : index
    %61 = vector.load %arg5[%c18_80, %c0_81] : memref<20x16xf32, #tpu.memory_space<vmem>>, vector<1x16xf32>
    tpu.vector_store %arg5[%c18_80, %c0_81], %60 {strides = array<i32>} : memref<20x16xf32, #tpu.memory_space<vmem>>, vector<1x16xf32>,
    %c0_82 = arith.constant 0 : index
    %c1_83 = arith.constant 1 : index
    %c13_84 = arith.constant 13 : index
    %c0_85 = arith.constant 0 : index
    %62 = vector.load %arg3[%c0_82, %c1_83, %c13_84, %c0_85] : memref<1x3x16x16xf32, #tpu.memory_space<vmem>>, vector<1x1x1x16xf32>
    %63 = vector.shape_cast %62 : vector<1x1x1x16xf32> to vector<1x16xf32>
    %c19_86 = arith.constant 19 : index
    %c0_87 = arith.constant 0 : index
    %64 = vector.load %arg5[%c19_86, %c0_87] : memref<20x16xf32, #tpu.memory_space<vmem>>, vector<1x16xf32>
    tpu.vector_store %arg5[%c19_86, %c0_87], %63 {strides = array<i32>} : memref<20x16xf32, #tpu.memory_space<vmem>>, vector<1x16xf32>,
    %c0_88 = arith.constant 0 : index
    %c0_89 = arith.constant 0 : index
    %65 = vector.load %arg5[%c0_88, %c0_89] : memref<20x16xf32, #tpu.memory_space<vmem>>, vector<16x16xf32>
    %66 = vector.broadcast %45 : f32 to vector<16x16xf32>
    %67 = arith.mulf %66, %65 : vector<16x16xf32>
    %c1_90 = arith.constant 1 : index
    %c0_91 = arith.constant 0 : index
    %68 = vector.load %arg5[%c1_90, %c0_91] : memref<20x16xf32, #tpu.memory_space<vmem>>, vector<16x16xf32>
    %69 = vector.broadcast %46 : f32 to vector<16x16xf32>
    %70 = arith.mulf %69, %68 : vector<16x16xf32>
    %71 = arith.addf %67, %70 : vector<16x16xf32>
    %c2_92 = arith.constant 2 : index
    %c0_93 = arith.constant 0 : index
    %72 = vector.load %arg5[%c2_92, %c0_93] : memref<20x16xf32, #tpu.memory_space<vmem>>, vector<16x16xf32>
    %73 = vector.broadcast %47 : f32 to vector<16x16xf32>
    %74 = arith.mulf %73, %72 : vector<16x16xf32>
    %75 = arith.addf %71, %74 : vector<16x16xf32>
    %c3_94 = arith.constant 3 : index
    %c0_95 = arith.constant 0 : index
    %76 = vector.load %arg5[%c3_94, %c0_95] : memref<20x16xf32, #tpu.memory_space<vmem>>, vector<16x16xf32>
    %77 = vector.broadcast %48 : f32 to vector<16x16xf32>
    %78 = arith.mulf %77, %76 : vector<16x16xf32>
    %79 = arith.addf %75, %78 : vector<16x16xf32>
    %c4_96 = arith.constant 4 : index
    %c0_97 = arith.constant 0 : index
    %80 = vector.load %arg5[%c4_96, %c0_97] : memref<20x16xf32, #tpu.memory_space<vmem>>, vector<16x16xf32>
    %81 = vector.broadcast %49 : f32 to vector<16x16xf32>
    %82 = arith.mulf %81, %80 : vector<16x16xf32>
    %83 = arith.addf %79, %82 : vector<16x16xf32>
    %c1_98 = arith.constant 1 : index
    %c0_99 = arith.constant 0 : index
    %c0_100 = arith.constant 0 : index
    %84 = vector.load %arg2[%c1_98, %c0_99, %c0_100] : memref<3x16x16xf32, #tpu.memory_space<vmem>>, vector<1x16x16xf32>
    %85 = vector.shape_cast %84 : vector<1x16x16xf32> to vector<16x16xf32>
    %cst_101 = arith.constant dense<0.000000e+00> : vector<16x16xf32>
    %86 = tpu.matmul %83, %85, %cst_101 {dimension_numbers = #tpu.dot_dimension_numbers<[1], [0], [0], [1], [0, 0, 1, 1], [], []>} : vector<16x16xf32>, vector<16x16xf32>, vector<16x16xf32> -> vector<16x16xf32>
    %c0_102 = arith.constant 0 : index
    %c1_103 = arith.constant 1 : index
    %c0_104 = arith.constant 0 : index
    %c0_105 = arith.constant 0 : index
    %87 = vector.load %arg4[%c0_102, %c1_103, %c0_104, %c0_105] : memref<1x3x16x16xf32, #tpu.memory_space<vmem>>, vector<1x1x16x16xf32>
    %88 = vector.shape_cast %87 : vector<1x1x16x16xf32> to vector<16x16xf32>
    %89 = vector.shape_cast %86 : vector<16x16xf32> to vector<1x1x16x16xf32>
    tpu.vector_store %arg4[%c0_102, %c1_103, %c0_104, %c0_105], %89 {strides = array<i32>} : memref<1x3x16x16xf32, #tpu.memory_space<vmem>>, vector<1x1x16x16xf32>,
    %c2_106 = arith.constant 2 : index
    %c0_107 = arith.constant 0 : index
    %90 = memref.load %arg1[%c2_106, %c0_107] : memref<3x5xf32, #tpu.memory_space<smem>>
    %c2_108 = arith.constant 2 : index
    %c1_109 = arith.constant 1 : index
    %91 = memref.load %arg1[%c2_108, %c1_109] : memref<3x5xf32, #tpu.memory_space<smem>>
    %c2_110 = arith.constant 2 : index
    %c2_111 = arith.constant 2 : index
    %92 = memref.load %arg1[%c2_110, %c2_111] : memref<3x5xf32, #tpu.memory_space<smem>>
    %c2_112 = arith.constant 2 : index
    %c3_113 = arith.constant 3 : index
    %93 = memref.load %arg1[%c2_112, %c3_113] : memref<3x5xf32, #tpu.memory_space<smem>>
    %c2_114 = arith.constant 2 : index
    %c4_115 = arith.constant 4 : index
    %94 = memref.load %arg1[%c2_114, %c4_115] : memref<3x5xf32, #tpu.memory_space<smem>>
    %c0_116 = arith.constant 0 : index
    %c2_117 = arith.constant 2 : index
    %c0_118 = arith.constant 0 : index
    %c0_119 = arith.constant 0 : index
    %95 = vector.load %arg3[%c0_116, %c2_117, %c0_118, %c0_119] : memref<1x3x16x16xf32, #tpu.memory_space<vmem>>, vector<1x1x16x16xf32>
    %96 = vector.shape_cast %95 : vector<1x1x16x16xf32> to vector<16x16xf32>
    %c2_120 = arith.constant 2 : index
    %c0_121 = arith.constant 0 : index
    %97 = vector.load %arg5[%c2_120, %c0_121] : memref<20x16xf32, #tpu.memory_space<vmem>>, vector<16x16xf32>
    tpu.vector_store %arg5[%c2_120, %c0_121], %96 {strides = array<i32>} : memref<20x16xf32, #tpu.memory_space<vmem>>, vector<16x16xf32>,
    %c0_122 = arith.constant 0 : index
    %c2_123 = arith.constant 2 : index
    %c2_124 = arith.constant 2 : index
    %c0_125 = arith.constant 0 : index
    %98 = vector.load %arg3[%c0_122, %c2_123, %c2_124, %c0_125] : memref<1x3x16x16xf32, #tpu.memory_space<vmem>>, vector<1x1x1x16xf32>
    %99 = vector.shape_cast %98 : vector<1x1x1x16xf32> to vector<1x16xf32>
    %c0_126 = arith.constant 0 : index
    %c0_127 = arith.constant 0 : index
    %100 = vector.load %arg5[%c0_126, %c0_127] : memref<20x16xf32, #tpu.memory_space<vmem>>, vector<1x16xf32>
    tpu.vector_store %arg5[%c0_126, %c0_127], %99 {strides = array<i32>} : memref<20x16xf32, #tpu.memory_space<vmem>>, vector<1x16xf32>,
    %c0_128 = arith.constant 0 : index
    %c2_129 = arith.constant 2 : index
    %c1_130 = arith.constant 1 : index
    %c0_131 = arith.constant 0 : index
    %101 = vector.load %arg3[%c0_128, %c2_129, %c1_130, %c0_131] : memref<1x3x16x16xf32, #tpu.memory_space<vmem>>, vector<1x1x1x16xf32>
    %102 = vector.shape_cast %101 : vector<1x1x1x16xf32> to vector<1x16xf32>
    %c1_132 = arith.constant 1 : index
    %c0_133 = arith.constant 0 : index
    %103 = vector.load %arg5[%c1_132, %c0_133] : memref<20x16xf32, #tpu.memory_space<vmem>>, vector<1x16xf32>
    tpu.vector_store %arg5[%c1_132, %c0_133], %102 {strides = array<i32>} : memref<20x16xf32, #tpu.memory_space<vmem>>, vector<1x16xf32>,
    %c0_134 = arith.constant 0 : index
    %c2_135 = arith.constant 2 : index
    %c14_136 = arith.constant 14 : index
    %c0_137 = arith.constant 0 : index
    %104 = vector.load %arg3[%c0_134, %c2_135, %c14_136, %c0_137] : memref<1x3x16x16xf32, #tpu.memory_space<vmem>>, vector<1x1x1x16xf32>
    %105 = vector.shape_cast %104 : vector<1x1x1x16xf32> to vector<1x16xf32>
    %c18_138 = arith.constant 18 : index
    %c0_139 = arith.constant 0 : index
    %106 = vector.load %arg5[%c18_138, %c0_139] : memref<20x16xf32, #tpu.memory_space<vmem>>, vector<1x16xf32>
    tpu.vector_store %arg5[%c18_138, %c0_139], %105 {strides = array<i32>} : memref<20x16xf32, #tpu.memory_space<vmem>>, vector<1x16xf32>,
    %c0_140 = arith.constant 0 : index
    %c2_141 = arith.constant 2 : index
    %c13_142 = arith.constant 13 : index
    %c0_143 = arith.constant 0 : index
    %107 = vector.load %arg3[%c0_140, %c2_141, %c13_142, %c0_143] : memref<1x3x16x16xf32, #tpu.memory_space<vmem>>, vector<1x1x1x16xf32>
    %108 = vector.shape_cast %107 : vector<1x1x1x16xf32> to vector<1x16xf32>
    %c19_144 = arith.constant 19 : index
    %c0_145 = arith.constant 0 : index
    %109 = vector.load %arg5[%c19_144, %c0_145] : memref<20x16xf32, #tpu.memory_space<vmem>>, vector<1x16xf32>
    tpu.vector_store %arg5[%c19_144, %c0_145], %108 {strides = array<i32>} : memref<20x16xf32, #tpu.memory_space<vmem>>, vector<1x16xf32>,
    %c0_146 = arith.constant 0 : index
    %c0_147 = arith.constant 0 : index
    %110 = vector.load %arg5[%c0_146, %c0_147] : memref<20x16xf32, #tpu.memory_space<vmem>>, vector<16x16xf32>
    %111 = vector.broadcast %90 : f32 to vector<16x16xf32>
    %112 = arith.mulf %111, %110 : vector<16x16xf32>
    %c1_148 = arith.constant 1 : index
    %c0_149 = arith.constant 0 : index
    %113 = vector.load %arg5[%c1_148, %c0_149] : memref<20x16xf32, #tpu.memory_space<vmem>>, vector<16x16xf32>
    %114 = vector.broadcast %91 : f32 to vector<16x16xf32>
    %115 = arith.mulf %114, %113 : vector<16x16xf32>
    %116 = arith.addf %112, %115 : vector<16x16xf32>
    %c2_150 = arith.constant 2 : index
    %c0_151 = arith.constant 0 : index
    %117 = vector.load %arg5[%c2_150, %c0_151] : memref<20x16xf32, #tpu.memory_space<vmem>>, vector<16x16xf32>
    %118 = vector.broadcast %92 : f32 to vector<16x16xf32>
    %119 = arith.mulf %118, %117 : vector<16x16xf32>
    %120 = arith.addf %116, %119 : vector<16x16xf32>
    %c3_152 = arith.constant 3 : index
    %c0_153 = arith.constant 0 : index
    %121 = vector.load %arg5[%c3_152, %c0_153] : memref<20x16xf32, #tpu.memory_space<vmem>>, vector<16x16xf32>
    %122 = vector.broadcast %93 : f32 to vector<16x16xf32>
    %123 = arith.mulf %122, %121 : vector<16x16xf32>
    %124 = arith.addf %120, %123 : vector<16x16xf32>
    %c4_154 = arith.constant 4 : index
    %c0_155 = arith.constant 0 : index
    %125 = vector.load %arg5[%c4_154, %c0_155] : memref<20x16xf32, #tpu.memory_space<vmem>>, vector<16x16xf32>
    %126 = vector.broadcast %94 : f32 to vector<16x16xf32>
    %127 = arith.mulf %126, %125 : vector<16x16xf32>
    %128 = arith.addf %124, %127 : vector<16x16xf32>
    %c2_156 = arith.constant 2 : index
    %c0_157 = arith.constant 0 : index
    %c0_158 = arith.constant 0 : index
    %129 = vector.load %arg2[%c2_156, %c0_157, %c0_158] : memref<3x16x16xf32, #tpu.memory_space<vmem>>, vector<1x16x16xf32>
    %130 = vector.shape_cast %129 : vector<1x16x16xf32> to vector<16x16xf32>
    %cst_159 = arith.constant dense<0.000000e+00> : vector<16x16xf32>
    %131 = tpu.matmul %128, %130, %cst_159 {dimension_numbers = #tpu.dot_dimension_numbers<[1], [0], [0], [1], [0, 0, 1, 1], [], []>} : vector<16x16xf32>, vector<16x16xf32>, vector<16x16xf32> -> vector<16x16xf32>
    %c0_160 = arith.constant 0 : index
    %c2_161 = arith.constant 2 : index
    %c0_162 = arith.constant 0 : index
    %c0_163 = arith.constant 0 : index
    %132 = vector.load %arg4[%c0_160, %c2_161, %c0_162, %c0_163] : memref<1x3x16x16xf32, #tpu.memory_space<vmem>>, vector<1x1x16x16xf32>
    %133 = vector.shape_cast %132 : vector<1x1x16x16xf32> to vector<16x16xf32>
    %134 = vector.shape_cast %131 : vector<16x16xf32> to vector<1x1x16x16xf32>
    tpu.vector_store %arg4[%c0_160, %c2_161, %c0_162, %c0_163], %134 {strides = array<i32>} : memref<1x3x16x16xf32, #tpu.memory_space<vmem>>, vector<1x1x16x16xf32>,
    return
  }
  func.func @transform_0(%arg0: i32) -> (i32, i32) {
    %c0_i32 = arith.constant 0 : i32
    %c0_i32_0 = arith.constant 0 : i32
    %c0_i32_1 = arith.constant 0 : i32
    return %c0_i32, %c0_i32_0 : i32, i32
  }
  func.func @transform_1(%arg0: i32) -> (i32, i32, i32) {
    %c0_i32 = arith.constant 0 : i32
    %c0_i32_0 = arith.constant 0 : i32
    %c0_i32_1 = arith.constant 0 : i32
    %c0_i32_2 = arith.constant 0 : i32
    return %c0_i32, %c0_i32_0, %c0_i32_1 : i32, i32, i32
  }
  func.func @transform_2(%arg0: i32) -> (i32, i32, i32, i32) {
    %c0_i32 = arith.constant 0 : i32
    %c0_i32_0 = arith.constant 0 : i32
    %c0_i32_1 = arith.constant 0 : i32
    %c0_i32_2 = arith.constant 0 : i32
    return %arg0, %c0_i32, %c0_i32_0, %c0_i32_1 : i32, i32, i32, i32
  }
  func.func @transform_3(%arg0: i32) -> (i32, i32, i32, i32) {
    %c0_i32 = arith.constant 0 : i32
    %c0_i32_0 = arith.constant 0 : i32
    %c0_i32_1 = arith.constant 0 : i32
    %c0_i32_2 = arith.constant 0 : i32
    return %arg0, %c0_i32, %c0_i32_0, %c0_i32_1 : i32, i32, i32, i32
  }
}

</mosaic_0001>

<llo_original>
// kernel: tpu_custom_call.1
$region0: #{tpu_custom_call.1}
  #allocation0 [shape = 'u32[]', space=smem, size = 0x4, offset = 0x4, fixed_abs, tag = 'smem constant byte address 0x4 - core index']
  #allocation1 [shape = 'u32[144,128]{1,0:T(1,128)}', space=vmem, size = 0x12000, scoped, tag = 'internal scratch']
  #allocation2 [shape = 'f32[20,16]{1,0:T(8,128)}', space=vmem, size = 0x3000, scoped, tag = 'scratch operand']
  %s0 = inlined_call_operand.hbm [shape: f32[3,5], index: 0, kind: input, shape index: {}]
  %s1 = inlined_call_operand.hbm [shape: f32[3,16,16], index: 1, kind: input, shape index: {}]
  %s2 = inlined_call_operand.hbm [shape: f32[2,3,16,16], index: 2, kind: input, shape index: {}]
  %s3 = inlined_call_operand.hbm [shape: f32[2,3,16,16], index: 3, kind: output, shape index: {}]
  %s4 = sld [smem:[#allocation0]]
  $region57: #{tpu_custom_call.1} parent=0
    _
  %s6 = ssub.s32 1, %s4
  %s7 = scalar_select 0, %s6, %s4
  $region1: #{tpu_custom_call.1} parent=0
    #allocation3 [shape = 'u8[2048]{0}', space=smem, size = 0x800, scoped, tag = 'input window, operand 0, single buffered']
    #allocation4 [shape = 's32[2]{0}', space=sflag, size = 0x8, scoped, tag = 'scoped memory for tpu_custom_call.1']
    #allocation5 [shape = 's32[2]{0}', space=sflag, size = 0x8, scoped, tag = 'scoped memory for tpu_custom_call.1']
    #allocation6 [shape = 's32[2]{0}', space=sflag, size = 0x8, scoped, tag = 'scoped memory for tpu_custom_call.1']
    #allocation7 [shape = 'u8[24576]{0}', space=vmem, size = 0x6000, scoped, tag = 'input window, operand 1, single buffered']
    #allocation8 [shape = 'u8[49152]{0}', space=vmem, size = 0xc000, scoped, tag = 'input window, operand 2']
    #allocation9 [shape = 's32[2]{0}', space=sflag, size = 0x8, scoped, tag = 'scoped memory for tpu_custom_call.1']
    #allocation10 [shape = 'u8[49152]{0}', space=vmem, size = 0xc000, scoped, tag = 'output window, operand 0']
    %8 = vsyncpa [#allocation6], 0
    %9 = vsyncpa [#allocation4], 0
    %10 = vsyncpa [#allocation9], 0
    %s11 = scalar_lea.sflag [#allocation9], 1
    %12 = vsyncpa %s11, 0
    %13 = vsyncpa [#allocation5], 0
    %s14 = scalar_lea.sflag [#allocation5], 1
    %15 = vsyncpa %s14, 0
    loop: start=0, step=1, limit=4
    $region2: #{tpu_custom_call.1} parent=1 // loop_pre_header
      _
    $region3: #{tpu_custom_call.1} parent=1 // loop_header
      %s17 = sphi 0, %s21
      %p18 = scmp.ge.s32.totalorder %s17, 4
      %s25 = sphi 0, %s25
      %s27 = sphi 0, %s25
      %s28 = sphi 0, %s27
      %s42 = sphi 0, %s28
      %s46 = sphi 0, %s46
      %s48 = sphi 0, %s46
      %s49 = sphi 0, %s48
      %s63 = sphi 0, %s49
      %s69 = sphi 0, %s71
      %s72 = sphi 0, %s69
      %s73 = sphi 0, %s72
      %s89 = sphi 0, %s73
      %s95 = sphi 0, %s97
      %s98 = sphi 0, %s95
      %s99 = sphi 0, %s98
      %s115 = sphi 0, %s99
    $region4: #{tpu_custom_call.1} parent=1 // loop_header_branch
      %20 = sbr.rel (%p18) target = $region8
    $region5: #{tpu_custom_call.1} parent=1 // loop_body
      %s22 = ssub.s32 %s17, 1
      %s23 = ssub.s32 %s17, 2
      %s24 = sadd.s32 %s17, 1
      %s26 = sadd.s32 %s25, 1
      %p29 = scmp.eq.s32.totalorder %s17, 1
      %p30 = scmp.ne.s32.totalorder %s25, %s27
      %p31 = scmp.eq.s32.totalorder %s17, 0
      %p32 = por %p30, %p31
      %p33 = scmp.ne.s32.totalorder %s25, %s27
      %p34 = scmp.eq.s32.totalorder %s22, 1
      %p35 = por %p33, %p34
      %p36 = scmp.ne.s32.totalorder %s27, %s28
      %p37 = scmp.eq.s32.totalorder %s22, 0
      %p38 = por %p36, %p37
      %p39 = scmp.ne.s32.totalorder %s27, %s28
      %p40 = scmp.eq.s32.totalorder %s23, 1
      %p41 = por %p39, %p40
      %p43 = scmp.ne.s32.totalorder %s28, %s42
      %p44 = scmp.eq.s32.totalorder %s23, 0
      %p45 = por %p43, %p44
      %s47 = sadd.s32 %s46, 1
      %p50 = scmp.eq.s32.totalorder %s17, 1
      %p51 = scmp.ne.s32.totalorder %s46, %s48
      %p52 = scmp.eq.s32.totalorder %s17, 0
      %p53 = por %p51, %p52
      %p54 = scmp.ne.s32.totalorder %s46, %s48
      %p55 = scmp.eq.s32.totalorder %s22, 1
      %p56 = por %p54, %p55
      %p57 = scmp.ne.s32.totalorder %s48, %s49
      %p58 = scmp.eq.s32.totalorder %s22, 0
      %p59 = por %p57, %p58
      %p60 = scmp.ne.s32.totalorder %s48, %s49
      %p61 = scmp.eq.s32.totalorder %s23, 1
      %p62 = por %p60, %p61
      %p64 = scmp.ne.s32.totalorder %s49, %s63
      %p65 = scmp.eq.s32.totalorder %s23, 0
      %p66 = por %p64, %p65
      %s67 = ssub.s32 %s17, %s24
      %p68 = scmp.eq.s32.totalorder %s67, 0
      %s70 = sadd.s32 %s69, 1
      %s71 = scalar_select %p68, %s69, %s70
      %p74 = pneg %p68
      %p75 = scmp.eq.s32.totalorder %s17, 1
      %p76 = por %p74, %p75
      %p77 = scmp.ne.s32.totalorder %s69, %s72
      %p78 = scmp.eq.s32.totalorder %s17, 0
      %p79 = por %p77, %p78
      %p80 = scmp.ne.s32.totalorder %s69, %s72
      %p81 = scmp.eq.s32.totalorder %s22, 1
      %p82 = por %p80, %p81
      %p83 = scmp.ne.s32.totalorder %s72, %s73
      %p84 = scmp.eq.s32.totalorder %s22, 0
      %p85 = por %p83, %p84
      %p86 = scmp.ne.s32.totalorder %s72, %s73
      %p87 = scmp.eq.s32.totalorder %s23, 1
      %p88 = por %p86, %p87
      %p90 = scmp.ne.s32.totalorder %s73, %s89
      %p91 = scmp.eq.s32.totalorder %s23, 0
      %p92 = por %p90, %p91
      %s93 = ssub.s32 %s17, %s24
      %p94 = scmp.eq.s32.totalorder %s93, 0
      %s96 = sadd.s32 %s95, 1
      %s97 = scalar_select %p94, %s95, %s96
      %p100 = pneg %p94
      %p101 = scmp.eq.s32.totalorder %s17, 1
      %p102 = por %p100, %p101
      %p103 = scmp.ne.s32.totalorder %s95, %s98
      %p104 = scmp.eq.s32.totalorder %s17, 0
      %p105 = por %p103, %p104
      %p106 = scmp.ne.s32.totalorder %s95, %s98
      %p107 = scmp.eq.s32.totalorder %s22, 1
      %p108 = por %p106, %p107
      %p109 = scmp.ne.s32.totalorder %s98, %s99
      %p110 = scmp.eq.s32.totalorder %s22, 0
      %p111 = por %p109, %p110
      %p112 = scmp.ne.s32.totalorder %s98, %s99
      %p113 = scmp.eq.s32.totalorder %s23, 1
      %p114 = por %p112, %p113
      %p116 = scmp.ne.s32.totalorder %s99, %s115
      %p117 = scmp.eq.s32.totalorder %s23, 0
      %p118 = por %p116, %p117
      %p119 = scmp.le.s32.totalorder 1, %s17
      %p120 = scmp.lt.s32.totalorder %s17, 3
      %p121 = pnand %p119, %p120
      %p122 = pneg %p121
      // Predicated region
      $region9: #{tpu_custom_call.1} parent=5 // pred_check
        _
      $region10: #{tpu_custom_call.1} parent=5 // pred_check_branch
        %124 = sbr.rel (%p121) target = $region12
      $region11: #{tpu_custom_call.1} parent=5 // pred_region
        %s125 = ssub.s32 %s17, 1
        // Predicated region
        $region13: #{tpu_custom_call.1} parent=11 // pred_check
          %p126 = pneg %p38
        $region14: #{tpu_custom_call.1} parent=11 // pred_check_branch
          %128 = sbr.rel (%p126) target = $region16
        $region15: #{tpu_custom_call.1} parent=11 // pred_region
          %s130 = ssub.s32 64, 64
          %131 = vsyncadd [#allocation6], %s130
          %134 = dma.hbm_to_smem %s0, 64, [#allocation3], [#allocation6]
        $region16: #{tpu_custom_call.1} parent=11 // pred_fallthru
          _
        // Predicated region
        $region17: #{tpu_custom_call.1} parent=11 // pred_check
          %p135 = pneg %p59
        $region18: #{tpu_custom_call.1} parent=11 // pred_check_branch
          %137 = sbr.rel (%p135) target = $region20
        $region19: #{tpu_custom_call.1} parent=11 // pred_region
          %s139 = ssub.s32 768, 768
          %140 = vsyncadd [#allocation4], %s139
          %s141 = sshll.u32 [#allocation7], 4
          %s142 = int_to_ptr.vmem [resolvable:$true] %s141
          %147 = dma.hbm_to_vmem [thread:$0]  %s1, 768, %s142, [#allocation4], 128, 128, 8
        $region20: #{tpu_custom_call.1} parent=11 // pred_fallthru
          _
      $region12: #{tpu_custom_call.1} parent=5 // pred_fallthru
        _
      %p148 = scmp.lt.s32.totalorder %s17, 2
      // Predicated region
      $region21: #{tpu_custom_call.1} parent=5 // pred_check
        %p149 = pneg %p148
      $region22: #{tpu_custom_call.1} parent=5 // pred_check_branch
        %151 = sbr.rel (%p149) target = $region24
      $region23: #{tpu_custom_call.1} parent=5 // pred_region
        // Predicated region
        $region25: #{tpu_custom_call.1} parent=23 // pred_check
          %p152 = pneg %p79
        $region26: #{tpu_custom_call.1} parent=23 // pred_check_branch
          %154 = sbr.rel (%p152) target = $region28
        $region27: #{tpu_custom_call.1} parent=23 // pred_region
          %s155 = sand.u32 %s69, 1
          %s156 = scalar_lea.sflag [#allocation9], %s155
          %s157 = sand.u32 %s69, 1
          %s158 = smul.addr %s157, 48
          %s159 = scalar_lea.vmem [#allocation8], %s158
          %s161 = ssub.s32 768, 768
          %162 = vsyncadd %s156, %s161
          %s163 = smul.addr %s17, 6
          %s164 = smul.addr %s163, 128
          %s165 = scalar_lea.hbm %s2, %s164
          %s166 = sshll.u32 %s159, 4
          %s167 = int_to_ptr.vmem [resolvable:$true] %s166
          %172 = dma.hbm_to_vmem [thread:$0]  %s165, 768, %s167, %s156, 128, 128, 8
        $region28: #{tpu_custom_call.1} parent=23 // pred_fallthru
          _
      $region24: #{tpu_custom_call.1} parent=5 // pred_fallthru
        _
      %p173 = scmp.le.s32.totalorder 1, %s17
      %p174 = scmp.lt.s32.totalorder %s17, 3
      %p175 = pnand %p173, %p174
      %p176 = pneg %p175
      // Predicated region
      $region29: #{tpu_custom_call.1} parent=5 // pred_check
        _
      $region30: #{tpu_custom_call.1} parent=5 // pred_check_branch
        %178 = sbr.rel (%p175) target = $region32
      $region31: #{tpu_custom_call.1} parent=5 // pred_region
        %s179 = ssub.s32 %s17, 1
        // Predicated region
        $region33: #{tpu_custom_call.1} parent=31 // pred_check
          %p180 = pneg %p38
        $region34: #{tpu_custom_call.1} parent=31 // pred_check_branch
          %182 = sbr.rel (%p180) target = $region36
        $region35: #{tpu_custom_call.1} parent=31 // pred_region
          %183 = dma.done [#allocation6], 64
        $region36: #{tpu_custom_call.1} parent=31 // pred_fallthru
          _
        // Predicated region
        $region37: #{tpu_custom_call.1} parent=31 // pred_check
          %p184 = pneg %p59
        $region38: #{tpu_custom_call.1} parent=31 // pred_check_branch
          %186 = sbr.rel (%p184) target = $region40
        $region39: #{tpu_custom_call.1} parent=31 // pred_region
          %187 = dma.done [#allocation4], 768
        $region40: #{tpu_custom_call.1} parent=31 // pred_fallthru
          _
        %s188 = sand.u32 %s72, 1
        %s189 = scalar_lea.sflag [#allocation9], %s188
        %s190 = sand.u32 %s72, 1
        %s191 = smul.addr %s190, 48
        %s192 = scalar_lea.vmem [#allocation8], %s191
        // Predicated region
        $region41: #{tpu_custom_call.1} parent=31 // pred_check
          %p193 = pneg %p85
        $region42: #{tpu_custom_call.1} parent=31 // pred_check_branch
          %195 = sbr.rel (%p193) target = $region44
        $region43: #{tpu_custom_call.1} parent=31 // pred_region
          %196 = dma.done %s189, 768
        $region44: #{tpu_custom_call.1} parent=31 // pred_fallthru
          _
        %197 = sfence
        %p198 = pneg %p38
        %p199 = pneg %p35
        %p200 = pneg %p59
        %p201 = pneg %p56
        %s202 = sand.u32 %s72, 1
        %s203 = scalar_lea.sflag [#allocation9], %s202
        %s204 = sand.u32 %s72, 1
        %s205 = smul.addr %s204, 48
        %s206 = scalar_lea.vmem [#allocation8], %s205
        %p207 = pneg %p85
        %p208 = pneg %p82
        %p209 = pneg %p111
        %p210 = pneg %p108
        %s211 = sand.u32 %s98, 1
        %s212 = scalar_lea.sflag [#allocation5], %s211
        %s213 = sand.u32 %s98, 1
        %s214 = smul.addr %s213, 48
        %s215 = scalar_lea.vmem [#allocation10], %s214
        %s216 = sld [smem:[#allocation3]]
        %s217 = sld [smem:[#allocation3 + $0x1]]
        %s218 = sld [smem:[#allocation3 + $0x2]]
        %s219 = sld [smem:[#allocation3 + $0x3]]
        %s220 = sld [smem:[#allocation3 + $0x4]]
        %v221 = vld [vmem:[%s192] sm:$0xff]
        %v222 = vld [vmem:[%s192 + $0x8] sm:$0xff]
        %vm223 = vcmask 130048
        %224 = vst.msk [vmem:[#allocation2 + $0x2] sm:$0xff] %vm223, %v221
        %225 = vst.msk [vmem:[#allocation2 + $0xa] sm:$0xff] %vm223, %v222
        %v226 = vld [vmem:[%s192 + $0x2] sm:$0x1]
        %vm227 = vcmask 122880
        %228 = vst.msk [vmem:[#allocation2] sm:$0x1] %vm227, %v226
        %v229 = vld [vmem:[%s192 + $0x1] sm:$0x1]
        %230 = vst.msk [vmem:[#allocation2 + $0x1] sm:$0x1] %vm227, %v229
        %v231 = vld [vmem:[%s192 + $0xe] sm:$0x1]
        %232 = vst.msk [vmem:[#allocation2 + $0x12] sm:$0x1] %vm227, %v231
        %v233 = vld [vmem:[%s192 + $0xd] sm:$0x1]
        %234 = vst.msk [vmem:[#allocation2 + $0x13] sm:$0x1] %vm227, %v233
        %v235 = vld [vmem:[#allocation2] sm:$0xff]
        %v236 = vld [vmem:[#allocation2 + $0x8] sm:$0xff]
        %v237 = vstv %s216
        %v238 = vmul.f32 %v237, %v235
        %v239 = vmul.f32 %v237, %v236
        %v240 = vld [vmem:[#allocation2 + $0x1] sm:$0xff]
        %v241 = vld [vmem:[#allocation2 + $0x9] sm:$0xff]
        %v242 = vstv %s217
        %v243 = vmul.f32 %v242, %v240
        %v244 = vmul.f32 %v242, %v241
        %v245 = vadd.f32 %v238, %v243
        %v246 = vadd.f32 %v239, %v244
        %v247 = vld [vmem:[#allocation2 + $0x2] sm:$0xff]
        %v248 = vld [vmem:[#allocation2 + $0xa] sm:$0xff]
        %v249 = vstv %s218
        %v250 = vmul.f32 %v249, %v247
        %v251 = vmul.f32 %v249, %v248
        %v252 = vadd.f32 %v245, %v250
        %v253 = vadd.f32 %v246, %v251
        %v254 = vld [vmem:[#allocation2 + $0x3] sm:$0xff]
        %v255 = vld [vmem:[#allocation2 + $0xb] sm:$0xff]
        %v256 = vstv %s219
        %v257 = vmul.f32 %v256, %v254
        %v258 = vmul.f32 %v256, %v255
        %v259 = vadd.f32 %v252, %v257
        %v260 = vadd.f32 %v253, %v258
        %v261 = vld [vmem:[#allocation2 + $0x4] sm:$0xff]
        %v262 = vld [vmem:[#allocation2 + $0xc] sm:$0xff]
        %v263 = vstv %s220
        %v264 = vmul.f32 %v263, %v261
        %v265 = vmul.f32 %v263, %v262
        %v266 = vadd.f32 %v259, %v264
        %v267 = vadd.f32 %v260, %v265
        %v268 = vld [vmem:[#allocation7] sm:$0xff]
        %v269 = vld [vmem:[#allocation7 + $0x8] sm:$0xff]
        %v271 = vsel %vm223, %v266, 0
        %v274 = vsel %vm223, %v267, 0
        %276 = vmatprep.subr.mxu0 0.0
        %277 = vmatpush1.msra.mxu0 %v268
        %278 = vmatprep.subr.mxu0 0.0
        %279 = vmatpush1.msra.mxu0 %v269
        %280 = vmatprep.subr.mxu0 0.0
        %281 = vmatpush1.msra.mxu0 0.0
        %282 = vmatprep.subr.mxu0 0.0
        %283 = vmatpush1.msra.mxu0 0.0
        %284 = vmatprep.subr.mxu0 0.0
        %285 = vmatpush1.msra.mxu0 0.0
        %286 = vmatprep.subr.mxu0 0.0
        %287 = vmatpush1.msra.mxu0 0.0
        %288 = vmatprep.subr.mxu0 0.0
        %289 = vmatpush1.msra.mxu0 0.0
        %290 = vmatprep.subr.mxu0 0.0
        %291 = vmatpush1.msra.mxu0 0.0
        %292 = vmatprep.subr.mxu0 0.0
        %293 = vmatpush1.msra.mxu0 0.0
        %294 = vmatprep.subr.mxu0 0.0
        %295 = vmatpush1.msra.mxu0 0.0
        %296 = vmatprep.subr.mxu0 0.0
        %297 = vmatpush1.msra.mxu0 0.0
        %298 = vmatprep.subr.mxu0 0.0
        %299 = vmatpush1.msra.mxu0 0.0
        %300 = vmatprep.subr.mxu0 0.0
        %301 = vmatpush1.msra.mxu0 0.0
        %302 = vmatprep.subr.mxu0 0.0
        %303 = vmatpush1.msra.mxu0 0.0
        %304 = vmatprep.subr.mxu0 0.0
        %305 = vmatpush1.msra.mxu0 0.0
        %306 = vmatprep.subr.mxu0 0.0
        %307 = vmatpush1.msra.mxu0 0.0
        %308 = vmatprep.subr.mxu0 0.0
        %309 = vmatpush1.msra.mxu0 0.0
        %310 = vmatprep.subr.mxu0 0.0
        %311 = vmatpush1.msra.mxu0 0.0
        %312 = vmatprep.subr.mxu0 0.0
        %313 = vmatpush1.msra.mxu0 0.0
        %314 = vmatprep.subr.mxu0 0.0
        %315 = vmatpush1.msra.mxu0 0.0
        %316 = vmatprep.subr.mxu0 0.0
        %317 = vmatpush1.msra.mxu0 0.0
        %318 = vmatprep.subr.mxu0 0.0
        %319 = vmatpush1.msra.mxu0 0.0
        %320 = vmatprep.subr.mxu0 0.0
        %321 = vmatpush1.msra.mxu0 0.0
        %322 = vmatprep.subr.mxu0 0.0
        %323 = vmatpush1.msra.mxu0 0.0
        %324 = vmatprep.subr.mxu0 0.0
        %325 = vmatpush1.msra.mxu0 0.0
        %326 = vmatprep.subr.mxu0 0.0
        %327 = vmatpush1.msra.mxu0 0.0
        %328 = vmatprep.subr.mxu0 0.0
        %329 = vmatpush1.msra.mxu0 0.0
        %330 = vmatprep.subr.mxu0 0.0
        %331 = vmatpush1.msra.mxu0 0.0
        %332 = vmatprep.subr.mxu0 0.0
        %333 = vmatpush1.msra.mxu0 0.0
        %334 = vmatprep.subr.mxu0 0.0
        %335 = vmatpush1.msra.mxu0 0.0
        %336 = vmatprep.subr.mxu0 0.0
        %337 = vmatpush1.msra.mxu0 0.0
        %338 = vmatprep.subr.mxu0 0.0
        %339 = vmatpush1.msra.mxu0 0.0
        %340 = vmatprep.mubr.f32.mxu0 0.0
        %341 = vmatmul.mubr.f32.gmra.mrb[0].mxu0 %v271
        %v342 = vpop.f32.mrb[0].mxu0
        %v343 = vadd.f32 0.0, %v342
        %v344 = vpop.f32.mrb[0].mxu0
        %345 = vmatprep.mubr.f32.mxu0 0.0
        %346 = vmatmul.mubr.f32.gmra.mrb[0].mxu0 %v274
        %v347 = vpop.f32.mrb[0].mxu0
        %v348 = vadd.f32 0.0, %v347
        %v349 = vpop.f32.mrb[0].mxu0
        %350 = vdwg.mxu0
        %351 = vst.msk [vmem:[%s215] sm:$0xff] %vm223, %v343
        %352 = vst.msk [vmem:[%s215 + $0x8] sm:$0xff] %vm223, %v348
        %s353 = sld [smem:[#allocation3 + $0x80]]
        %s354 = sld [smem:[#allocation3 + $0x81]]
        %s355 = sld [smem:[#allocation3 + $0x82]]
        %s356 = sld [smem:[#allocation3 + $0x83]]
        %s357 = sld [smem:[#allocation3 + $0x84]]
        %s358 = scalar_lea.vmem %s192, 16 [#allocation8]
        %v359 = vld [vmem:[%s358] sm:$0xff]
        %v360 = vld [vmem:[%s358 + $0x8] sm:$0xff]
        %361 = vst.msk [vmem:[#allocation2 + $0x2] sm:$0xff] %vm223, %v359
        %362 = vst.msk [vmem:[#allocation2 + $0xa] sm:$0xff] %vm223, %v360
        %v363 = vld [vmem:[%s358 + $0x2] sm:$0x1]
        %364 = vst.msk [vmem:[#allocation2] sm:$0x1] %vm227, %v363
        %v365 = vld [vmem:[%s358 + $0x1] sm:$0x1]
        %366 = vst.msk [vmem:[#allocation2 + $0x1] sm:$0x1] %vm227, %v365
        %v367 = vld [vmem:[%s358 + $0xe] sm:$0x1]
        %368 = vst.msk [vmem:[#allocation2 + $0x12] sm:$0x1] %vm227, %v367
        %v369 = vld [vmem:[%s358 + $0xd] sm:$0x1]
        %370 = vst.msk [vmem:[#allocation2 + $0x13] sm:$0x1] %vm227, %v369
        %v371 = vld [vmem:[#allocation2] sm:$0xff]
        %v372 = vld [vmem:[#allocation2 + $0x8] sm:$0xff]
        %v373 = vstv %s353
        %v374 = vmul.f32 %v373, %v371
        %v375 = vmul.f32 %v373, %v372
        %v376 = vld [vmem:[#allocation2 + $0x1] sm:$0xff]
        %v377 = vld [vmem:[#allocation2 + $0x9] sm:$0xff]
        %v378 = vstv %s354
        %v379 = vmul.f32 %v378, %v376
        %v380 = vmul.f32 %v378, %v377
        %v381 = vadd.f32 %v374, %v379
        %v382 = vadd.f32 %v375, %v380
        %v383 = vld [vmem:[#allocation2 + $0x2] sm:$0xff]
        %v384 = vld [vmem:[#allocation2 + $0xa] sm:$0xff]
        %v385 = vstv %s355
        %v386 = vmul.f32 %v385, %v383
        %v387 = vmul.f32 %v385, %v384
        %v388 = vadd.f32 %v381, %v386
        %v389 = vadd.f32 %v382, %v387
        %v390 = vld [vmem:[#allocation2 + $0x3] sm:$0xff]
        %v391 = vld [vmem:[#allocation2 + $0xb] sm:$0xff]
        %v392 = vstv %s356
        %v393 = vmul.f32 %v392, %v390
        %v394 = vmul.f32 %v392, %v391
        %v395 = vadd.f32 %v388, %v393
        %v396 = vadd.f32 %v389, %v394
        %v397 = vld [vmem:[#allocation2 + $0x4] sm:$0xff]
        %v398 = vld [vmem:[#allocation2 + $0xc] sm:$0xff]
        %v399 = vstv %s357
        %v400 = vmul.f32 %v399, %v397
        %v401 = vmul.f32 %v399, %v398
        %v402 = vadd.f32 %v395, %v400
        %v403 = vadd.f32 %v396, %v401
        %s404 = scalar_lea.vmem [#allocation7], 16
        %v405 = vld [vmem:[%s404] sm:$0xff]
        %v406 = vld [vmem:[%s404 + $0x8] sm:$0xff]
        %v408 = vsel %vm223, %v402, 0
        %v411 = vsel %vm223, %v403, 0
        %413 = vmatprep.subr.mxu0 0.0
        %414 = vmatpush1.msra.mxu0 %v405
        %415 = vmatprep.subr.mxu0 0.0
        %416 = vmatpush1.msra.mxu0 %v406
        %417 = vmatprep.subr.mxu0 0.0
        %418 = vmatpush1.msra.mxu0 0.0
        %419 = vmatprep.subr.mxu0 0.0
        %420 = vmatpush1.msra.mxu0 0.0
        %421 = vmatprep.subr.mxu0 0.0
        %422 = vmatpush1.msra.mxu0 0.0
        %423 = vmatprep.subr.mxu0 0.0
        %424 = vmatpush1.msra.mxu0 0.0
        %425 = vmatprep.subr.mxu0 0.0
        %426 = vmatpush1.msra.mxu0 0.0
        %427 = vmatprep.subr.mxu0 0.0
        %428 = vmatpush1.msra.mxu0 0.0
        %429 = vmatprep.subr.mxu0 0.0
        %430 = vmatpush1.msra.mxu0 0.0
        %431 = vmatprep.subr.mxu0 0.0
        %432 = vmatpush1.msra.mxu0 0.0
        %433 = vmatprep.subr.mxu0 0.0
        %434 = vmatpush1.msra.mxu0 0.0
        %435 = vmatprep.subr.mxu0 0.0
        %436 = vmatpush1.msra.mxu0 0.0
        %437 = vmatprep.subr.mxu0 0.0
        %438 = vmatpush1.msra.mxu0 0.0
        %439 = vmatprep.subr.mxu0 0.0
        %440 = vmatpush1.msra.mxu0 0.0
        %441 = vmatprep.subr.mxu0 0.0
        %442 = vmatpush1.msra.mxu0 0.0
        %443 = vmatprep.subr.mxu0 0.0
        %444 = vmatpush1.msra.mxu0 0.0
        %445 = vmatprep.subr.mxu0 0.0
        %446 = vmatpush1.msra.mxu0 0.0
        %447 = vmatprep.subr.mxu0 0.0
        %448 = vmatpush1.msra.mxu0 0.0
        %449 = vmatprep.subr.mxu0 0.0
        %450 = vmatpush1.msra.mxu0 0.0
        %451 = vmatprep.subr.mxu0 0.0
        %452 = vmatpush1.msra.mxu0 0.0
        %453 = vmatprep.subr.mxu0 0.0
        %454 = vmatpush1.msra.mxu0 0.0
        %455 = vmatprep.subr.mxu0 0.0
        %456 = vmatpush1.msra.mxu0 0.0
        %457 = vmatprep.subr.mxu0 0.0
        %458 = vmatpush1.msra.mxu0 0.0
        %459 = vmatprep.subr.mxu0 0.0
        %460 = vmatpush1.msra.mxu0 0.0
        %461 = vmatprep.subr.mxu0 0.0
        %462 = vmatpush1.msra.mxu0 0.0
        %463 = vmatprep.subr.mxu0 0.0
        %464 = vmatpush1.msra.mxu0 0.0
        %465 = vmatprep.subr.mxu0 0.0
        %466 = vmatpush1.msra.mxu0 0.0
        %467 = vmatprep.subr.mxu0 0.0
        %468 = vmatpush1.msra.mxu0 0.0
        %469 = vmatprep.subr.mxu0 0.0
        %470 = vmatpush1.msra.mxu0 0.0
        %471 = vmatprep.subr.mxu0 0.0
        %472 = vmatpush1.msra.mxu0 0.0
        %473 = vmatprep.subr.mxu0 0.0
        %474 = vmatpush1.msra.mxu0 0.0
        %475 = vmatprep.subr.mxu0 0.0
        %476 = vmatpush1.msra.mxu0 0.0
        %477 = vmatprep.mubr.f32.mxu0 0.0
        %478 = vmatmul.mubr.f32.gmra.mrb[0].mxu0 %v408
        %v479 = vpop.f32.mrb[0].mxu0
        %v480 = vadd.f32 0.0, %v479
        %v481 = vpop.f32.mrb[0].mxu0
        %482 = vmatprep.mubr.f32.mxu0 0.0
        %483 = vmatmul.mubr.f32.gmra.mrb[0].mxu0 %v411
        %v484 = vpop.f32.mrb[0].mxu0
        %v485 = vadd.f32 0.0, %v484
        %v486 = vpop.f32.mrb[0].mxu0
        %487 = vdwg.mxu0
        %s488 = scalar_lea.vmem %s215, 16 [#allocation10]
        %489 = vst.msk [vmem:[%s488] sm:$0xff] %vm223, %v480
        %490 = vst.msk [vmem:[%s488 + $0x8] sm:$0xff] %vm223, %v485
        %s491 = sld [smem:[#allocation3 + $0x100]]
        %s492 = sld [smem:[#allocation3 + $0x101]]
        %s493 = sld [smem:[#allocation3 + $0x102]]
        %s494 = sld [smem:[#allocation3 + $0x103]]
        %s495 = sld [smem:[#allocation3 + $0x104]]
        %s496 = scalar_lea.vmem %s192, 32 [#allocation8]
        %v497 = vld [vmem:[%s496] sm:$0xff]
        %v498 = vld [vmem:[%s496 + $0x8] sm:$0xff]
        %499 = vst.msk [vmem:[#allocation2 + $0x2] sm:$0xff] %vm223, %v497
        %500 = vst.msk [vmem:[#allocation2 + $0xa] sm:$0xff] %vm223, %v498
        %v501 = vld [vmem:[%s496 + $0x2] sm:$0x1]
        %502 = vst.msk [vmem:[#allocation2] sm:$0x1] %vm227, %v501
        %v503 = vld [vmem:[%s496 + $0x1] sm:$0x1]
        %504 = vst.msk [vmem:[#allocation2 + $0x1] sm:$0x1] %vm227, %v503
        %v505 = vld [vmem:[%s496 + $0xe] sm:$0x1]
        %506 = vst.msk [vmem:[#allocation2 + $0x12] sm:$0x1] %vm227, %v505
        %v507 = vld [vmem:[%s496 + $0xd] sm:$0x1]
        %508 = vst.msk [vmem:[#allocation2 + $0x13] sm:$0x1] %vm227, %v507
        %v509 = vld [vmem:[#allocation2] sm:$0xff]
        %v510 = vld [vmem:[#allocation2 + $0x8] sm:$0xff]
        %v511 = vstv %s491
        %v512 = vmul.f32 %v511, %v509
        %v513 = vmul.f32 %v511, %v510
        %v514 = vld [vmem:[#allocation2 + $0x1] sm:$0xff]
        %v515 = vld [vmem:[#allocation2 + $0x9] sm:$0xff]
        %v516 = vstv %s492
        %v517 = vmul.f32 %v516, %v514
        %v518 = vmul.f32 %v516, %v515
        %v519 = vadd.f32 %v512, %v517
        %v520 = vadd.f32 %v513, %v518
        %v521 = vld [vmem:[#allocation2 + $0x2] sm:$0xff]
        %v522 = vld [vmem:[#allocation2 + $0xa] sm:$0xff]
        %v523 = vstv %s493
        %v524 = vmul.f32 %v523, %v521
        %v525 = vmul.f32 %v523, %v522
        %v526 = vadd.f32 %v519, %v524
        %v527 = vadd.f32 %v520, %v525
        %v528 = vld [vmem:[#allocation2 + $0x3] sm:$0xff]
        %v529 = vld [vmem:[#allocation2 + $0xb] sm:$0xff]
        %v530 = vstv %s494
        %v531 = vmul.f32 %v530, %v528
        %v532 = vmul.f32 %v530, %v529
        %v533 = vadd.f32 %v526, %v531
        %v534 = vadd.f32 %v527, %v532
        %v535 = vld [vmem:[#allocation2 + $0x4] sm:$0xff]
        %v536 = vld [vmem:[#allocation2 + $0xc] sm:$0xff]
        %v537 = vstv %s495
        %v538 = vmul.f32 %v537, %v535
        %v539 = vmul.f32 %v537, %v536
        %v540 = vadd.f32 %v533, %v538
        %v541 = vadd.f32 %v534, %v539
        %s542 = scalar_lea.vmem [#allocation7], 32
        %v543 = vld [vmem:[%s542] sm:$0xff]
        %v544 = vld [vmem:[%s542 + $0x8] sm:$0xff]
        %v546 = vsel %vm223, %v540, 0
        %v549 = vsel %vm223, %v541, 0
        %551 = vmatprep.subr.mxu0 0.0
        %552 = vmatpush1.msra.mxu0 %v543
        %553 = vmatprep.subr.mxu0 0.0
        %554 = vmatpush1.msra.mxu0 %v544
        %555 = vmatprep.subr.mxu0 0.0
        %556 = vmatpush1.msra.mxu0 0.0
        %557 = vmatprep.subr.mxu0 0.0
        %558 = vmatpush1.msra.mxu0 0.0
        %559 = vmatprep.subr.mxu0 0.0
        %560 = vmatpush1.msra.mxu0 0.0
        %561 = vmatprep.subr.mxu0 0.0
        %562 = vmatpush1.msra.mxu0 0.0
        %563 = vmatprep.subr.mxu0 0.0
        %564 = vmatpush1.msra.mxu0 0.0
        %565 = vmatprep.subr.mxu0 0.0
        %566 = vmatpush1.msra.mxu0 0.0
        %567 = vmatprep.subr.mxu0 0.0
        %568 = vmatpush1.msra.mxu0 0.0
        %569 = vmatprep.subr.mxu0 0.0
        %570 = vmatpush1.msra.mxu0 0.0
        %571 = vmatprep.subr.mxu0 0.0
        %572 = vmatpush1.msra.mxu0 0.0
        %573 = vmatprep.subr.mxu0 0.0
        %574 = vmatpush1.msra.mxu0 0.0
        %575 = vmatprep.subr.mxu0 0.0
        %576 = vmatpush1.msra.mxu0 0.0
        %577 = vmatprep.subr.mxu0 0.0
        %578 = vmatpush1.msra.mxu0 0.0
        %579 = vmatprep.subr.mxu0 0.0
        %580 = vmatpush1.msra.mxu0 0.0
        %581 = vmatprep.subr.mxu0 0.0
        %582 = vmatpush1.msra.mxu0 0.0
        %583 = vmatprep.subr.mxu0 0.0
        %584 = vmatpush1.msra.mxu0 0.0
        %585 = vmatprep.subr.mxu0 0.0
        %586 = vmatpush1.msra.mxu0 0.0
        %587 = vmatprep.subr.mxu0 0.0
        %588 = vmatpush1.msra.mxu0 0.0
        %589 = vmatprep.subr.mxu0 0.0
        %590 = vmatpush1.msra.mxu0 0.0
        %591 = vmatprep.subr.mxu0 0.0
        %592 = vmatpush1.msra.mxu0 0.0
        %593 = vmatprep.subr.mxu0 0.0
        %594 = vmatpush1.msra.mxu0 0.0
        %595 = vmatprep.subr.mxu0 0.0
        %596 = vmatpush1.msra.mxu0 0.0
        %597 = vmatprep.subr.mxu0 0.0
        %598 = vmatpush1.msra.mxu0 0.0
        %599 = vmatprep.subr.mxu0 0.0
        %600 = vmatpush1.msra.mxu0 0.0
        %601 = vmatprep.subr.mxu0 0.0
        %602 = vmatpush1.msra.mxu0 0.0
        %603 = vmatprep.subr.mxu0 0.0
        %604 = vmatpush1.msra.mxu0 0.0
        %605 = vmatprep.subr.mxu0 0.0
        %606 = vmatpush1.msra.mxu0 0.0
        %607 = vmatprep.subr.mxu0 0.0
        %608 = vmatpush1.msra.mxu0 0.0
        %609 = vmatprep.subr.mxu0 0.0
        %610 = vmatpush1.msra.mxu0 0.0
        %611 = vmatprep.subr.mxu0 0.0
        %612 = vmatpush1.msra.mxu0 0.0
        %613 = vmatprep.subr.mxu0 0.0
        %614 = vmatpush1.msra.mxu0 0.0
        %615 = vmatprep.mubr.f32.mxu0 0.0
        %616 = vmatmul.mubr.f32.gmra.mrb[0].mxu0 %v546
        %v617 = vpop.f32.mrb[0].mxu0
        %v618 = vadd.f32 0.0, %v617
        %v619 = vpop.f32.mrb[0].mxu0
        %620 = vmatprep.mubr.f32.mxu0 0.0
        %621 = vmatmul.mubr.f32.gmra.mrb[0].mxu0 %v549
        %v622 = vpop.f32.mrb[0].mxu0
        %v623 = vadd.f32 0.0, %v622
        %v624 = vpop.f32.mrb[0].mxu0
        %625 = vdwg.mxu0
        %s626 = scalar_lea.vmem %s215, 32 [#allocation10]
        %627 = vst.msk [vmem:[%s626] sm:$0xff] %vm223, %v618
        %628 = vst.msk [vmem:[%s626 + $0x8] sm:$0xff] %vm223, %v623
        %s629 = sand.u32 %s98, 1
        %s630 = scalar_lea.sflag [#allocation5], %s629
        %s631 = sand.u32 %s98, 1
        %s632 = smul.addr %s631, 48
        %s633 = scalar_lea.vmem [#allocation10], %s632
        // Predicated region
        $region45: #{tpu_custom_call.1} parent=31 // pred_check
          %p634 = pneg %p108
        $region46: #{tpu_custom_call.1} parent=31 // pred_check_branch
          %636 = sbr.rel (%p634) target = $region48
        $region47: #{tpu_custom_call.1} parent=31 // pred_region
          %s638 = ssub.s32 768, 768
          %639 = vsyncadd %s630, %s638
          %s640 = smul.addr %s22, 6
          %s641 = smul.addr %s640, 128
          %s642 = scalar_lea.hbm %s3, %s641
          %s643 = sshll.u32 %s633, 4
          %s644 = int_to_ptr.vmem [resolvable:$true] %s643
          %649 = dma.vmem_to_hbm [thread:$0]  %s644, 768, %s642, %s630, 128, 128, 8
        $region48: #{tpu_custom_call.1} parent=31 // pred_fallthru
          _
      $region32: #{tpu_custom_call.1} parent=5 // pred_fallthru
        _
      %p650 = scmp.le.s32.totalorder 2, %s17
      // Predicated region
      $region49: #{tpu_custom_call.1} parent=5 // pred_check
        %p651 = pneg %p650
      $region50: #{tpu_custom_call.1} parent=5 // pred_check_branch
        %653 = sbr.rel (%p651) target = $region52
      $region51: #{tpu_custom_call.1} parent=5 // pred_region
        %s654 = ssub.s32 %s17, 2
        // Predicated region
        $region53: #{tpu_custom_call.1} parent=51 // pred_check
          %p655 = pneg %p114
        $region54: #{tpu_custom_call.1} parent=51 // pred_check_branch
          %657 = sbr.rel (%p655) target = $region56
        $region55: #{tpu_custom_call.1} parent=51 // pred_region
          %s658 = sand.u32 %s99, 1
          %s659 = scalar_lea.sflag [#allocation5], %s658
          %s660 = sand.u32 %s99, 1
          %s661 = smul.addr %s660, 48
          %s662 = scalar_lea.vmem [#allocation10], %s661
          %663 = dma.done %s659, 768
        $region56: #{tpu_custom_call.1} parent=51 // pred_fallthru
          _
      $region52: #{tpu_custom_call.1} parent=5 // pred_fallthru
        _
    $region6: #{tpu_custom_call.1} parent=1 // loop_footer
      %s21 = sadd.s32 1, %s17
    $region7: #{tpu_custom_call.1} parent=1 // loop_footer_branch
      %16 = sbr.rel target = $region3
    $region8: #{tpu_custom_call.1} parent=1 // loop_exit
      _
    %664 = vsyncpa [#allocation4], 1
    %s665 = scalar_lea.sflag [#allocation4], 1
    %666 = vsyncpa %s665, 1
    %667 = vsyncpa [#allocation9], 1
    %s668 = scalar_lea.sflag [#allocation9], 1
    %669 = vsyncpa %s668, 1
    %670 = vsyncpa [#allocation5], 1
    %s671 = scalar_lea.sflag [#allocation5], 1
    %672 = vsyncpa %s671, 1
    %673 = vsyncpa [#allocation6], 1
    %s674 = scalar_lea.sflag [#allocation6], 1
    %675 = vsyncpa %s674, 1

</llo_original>
